<compile_context>
chip_gen: v5e
topology: v5e:2x2
jax: 0.10.0
libtpu: 0.0.40
codegen_flags: <defaults>
</compile_context>

<pallas_src>
import jax
import jax.numpy as jnp
from jax import lax
from jax.experimental import pallas as pl
from jax.experimental.pallas import tpu as pltpu

EPS = 1e-3


def _conv_tile(x_ref, xnext_ref, w_ref):
    """Packed transposed-conv matmul for one row-block tile.

    x_ref    : (1, tr, Wp+1, Cin)  padded NHWC rows [r*tr, r*tr+tr)
    xnext_ref: (1, 1,  Wp+1, Cin)  padded NHWC row  r*tr+tr (the row below the tile)
    w_ref    : (4*Cin, 4*Cout)     block ConvTranspose weight ([x00|x01|x10|x11] rows,
                                   [ee|eo|oe|oo] output-parity columns)
    returns  : (tr*Wp, 4*Cout) f32 - all 4 output parities for every input pixel of the tile.
    """
    top = x_ref[0]                                             # (tr, Wp+1, Cin)
    bot = jnp.concatenate([top[1:], xnext_ref[0]], axis=0)     # rows shifted down by one
    tr, wp1, cin = top.shape
    wp = wp1 - 1
    # The four shifted operands are plain VMEM slices of the padded tile (no HBM duplication).
    x4 = jnp.concatenate(
        [top[:, :wp, :],   # x[i,   j  ]
         top[:, 1:, :],    # x[i,   j+1]
         bot[:, :wp, :],   # x[i+1, j  ]
         bot[:, 1:, :]],   # x[i+1, j+1]
        axis=-1)                                               # (tr, Wp, 4*Cin)
    x2 = x4.reshape(tr * wp, 4 * cin)                          # Wp % 8 == 0 -> layout no-op
    # One MXU push per tile, f32 accumulation (bf16 operands take the fast MXU path).
    return jnp.dot(x2, w_ref[...], preferred_element_type=jnp.float32)


def stats_kernel(x_ref, xnext_ref, w_ref, part_ref):
    """Pass 1: per-tile partial sum / sum-of-squares (padded rows/cols are exactly 0)."""
    y = _conv_tile(x_ref, xnext_ref, w_ref)
    s = jnp.sum(y, axis=0, keepdims=True)          # (1, 4*Cout)
    q = jnp.sum(y * y, axis=0, keepdims=True)      # (1, 4*Cout)
    part_ref[0, 0] = jnp.concatenate([s, q], axis=0)


def apply_kernel(x_ref, xnext_ref, w_ref, scale_ref, shift_ref, out_ref):
    """Pass 2: recompute conv tile, apply BN affine + ReLU, lane-dense store."""
    y = _conv_tile(x_ref, xnext_ref, w_ref)
    o = jnp.maximum(y * scale_ref[...] + shift_ref[...], 0.0)
    out_ref[...] = o.reshape(out_ref.shape).astype(out_ref.dtype)


def _vmem_limit_bytes(tr, wp, cin, cout, in_bytes):
    """Derive the scoped-VMEM limit from the actual (double-buffered) tile shapes."""
    tile_in = (tr + 1) * (wp + 1) * cin * in_bytes        # row-block + extra row
    w_blk = 16 * cin * cout * in_bytes                    # (4*Cin, 4*Cout)
    tile_y = tr * wp * 4 * cout * 4                       # f32 conv output / store tile
    tile_x4 = tr * wp * 4 * cin * in_bytes                # in-kernel packed operand
    need = 2 * (tile_in + w_blk + tile_y) + tile_x4 + tile_y
    # >= 32 MiB (v5e's default scoped limit is only 16 MiB); <= 96 MiB (well inside the
    # 128 MiB of v5e/v6e). On v7x (64 MiB physical) pick a smaller tile_rows if this is hit.
    return int(max(32 * 1024 * 1024, min(2 * need, 96 * 1024 * 1024)))


def upsampler_block(x_nchw, weight, bias, gamma, beta, *,
                    tile_rows=None, matmul_dtype=jnp.bfloat16):
    """x_nchw: (N, Cin, H, W); weight: (Cin, Cout, 3, 3) (PyTorch ConvTranspose2d layout)."""
    # Conv bias cancels exactly under training-mode BatchNorm (batch-mean subtraction).
    # (Only valid in training mode; eval-mode running stats would need the bias re-added.)
    del bias
    N, Cin, H, W = x_nchw.shape
    Cout = weight.shape[1]

    if tile_rows is None:
        tile_rows = max(2, 1024 // max(W, 1))             # ~1K pixels per tile by default
    tr = max(2, min(int(tile_rows), max(H, 2)))
    hg = -(-H // tr)                                      # row-blocks per image
    hp = hg * tr                                          # H padded to a multiple of tr
    wp = ((W + 7) // 8) * 8                               # W padded to a multiple of 8

    # Single padded NHWC copy of the input, cast once to the MXU dtype (bf16 halves DMA bytes).
    x_nhwc = jnp.transpose(x_nchw, (0, 2, 3, 1)).astype(matmul_dtype)
    xp = jnp.pad(x_nhwc, ((0, 0), (0, hp - H + 1), (0, wp - W + 1), (0, 0)))
    # xp: (N, hp+1, wp+1, Cin); all padding is exact zero -> contributes nothing to BN stats.

    # Block ConvTranspose weight. Stride-2/pad-1/out-pad-1 transposed conv splits by output
    # parity; rows are the [x00|x01|x10|x11] input blocks, columns the [ee|eo|oe|oo] parities.
    w9 = jnp.transpose(weight, (2, 3, 0, 1)).reshape(9, Cin, Cout).astype(matmul_dtype)
    z = jnp.zeros((Cin, Cout), matmul_dtype)
    wb = jnp.concatenate([
        jnp.concatenate([w9[4], w9[5], w9[7], w9[8]], axis=1),   # x00 taps
        jnp.concatenate([z,     w9[3], z,     w9[6]], axis=1),   # x01 taps
        jnp.concatenate([z,     z,     w9[1], w9[2]], axis=1),   # x10 taps
        jnp.concatenate([z,     z,     z,     w9[0]], axis=1),   # x11 taps
    ], axis=0)                                                   # (4*Cin, 4*Cout)

    in_bytes = jnp.dtype(matmul_dtype).itemsize
    vmem_limit = _vmem_limit_bytes(tr, wp, Cin, Cout, in_bytes)

    x_specs = [
        # Current row-block of the padded input.
        pl.BlockSpec((1, tr, wp + 1, Cin), lambda n, r: (n, r, 0, 0)),
        # The single padded row just below the block (block dim 1 => element offset), so the
        # x[i+1,*] taps never require an overlapping/duplicated HBM slab.
        pl.BlockSpec((1, 1, wp + 1, Cin), lambda n, r: (n, (r + 1) * tr, 0, 0)),
        # Constant-indexed block weight. (pl.Buffered(1) would drop its redundant second
        # pipeline buffer for large Cin/Cout; left default-buffered here - it is tiny.)
        pl.BlockSpec((4 * Cin, 4 * Cout), lambda n, r: (0, 0)),
    ]

    # ---- pass 1: per-tile partial BN statistics (fully parallel grid -> both v7x TCs) ----
    partials = pl.pallas_call(
        stats_kernel,
        out_shape=jax.ShapeDtypeStruct((N, hg, 2, 4 * Cout), jnp.float32),
        grid_spec=pltpu.PrefetchScalarGridSpec(
            num_scalar_prefetch=0,
            grid=(N, hg),
            in_specs=x_specs,
            out_specs=pl.BlockSpec((1, 1, 2, 4 * Cout), lambda n, r: (n, r, 0, 0)),
        ),
        compiler_params=pltpu.CompilerParams(
            dimension_semantics=("parallel", "parallel"),
            vmem_limit_bytes=vmem_limit,
        ),
    )(xp, xp, wb)

    # ---- tiny XLA reduction: fold tiles + parities into per-channel BN scale/shift ----
    sums = jnp.sum(partials, axis=(0, 1))                        # (2, 4*Cout)
    sum_c = jnp.sum(sums[0].reshape(4, Cout), axis=0)            # per-channel sum
    sq_c = jnp.sum(sums[1].reshape(4, Cout), axis=0)             # per-channel sum of squares
    cnt = jnp.float32(4 * N * H * W)                             # N * 2H * 2W output pixels
    mean = sum_c / cnt
    var = sq_c / cnt - mean * mean                               # biased batch variance
    inv = lax.rsqrt(var + EPS)
    sc = gamma.astype(jnp.float32) * inv
    sh = beta.astype(jnp.float32) - mean * sc
    scale4 = jnp.tile(sc, 4).reshape(1, 4 * Cout)                # parity-packed lane layout
    shift4 = jnp.tile(sh, 4).reshape(1, 4 * Cout)

    # ---- pass 2: recompute conv tile, BN affine + ReLU (fully parallel grid) ----
    out = pl.pallas_call(
        apply_kernel,
        out_shape=jax.ShapeDtypeStruct((N, hp, wp, 4 * Cout), x_nchw.dtype),
        grid_spec=pltpu.PrefetchScalarGridSpec(
            num_scalar_prefetch=0,
            grid=(N, hg),
            in_specs=x_specs + [
                pl.BlockSpec((1, 4 * Cout), lambda n, r: (0, 0)),
                pl.BlockSpec((1, 4 * Cout), lambda n, r: (0, 0)),
            ],
            out_specs=pl.BlockSpec((1, tr, wp, 4 * Cout), lambda n, r: (n, r, 0, 0)),
        ),
        compiler_params=pltpu.CompilerParams(
            dimension_semantics=("parallel", "parallel"),
            vmem_limit_bytes=vmem_limit,
        ),
    )(xp, xp, wb, scale4, shift4)

    # ---- single fused transpose: parity un-interleave + NHWC -> NCHW ----
    y = out[:, :H, :W, :].reshape(N, H, W, 2, 2, Cout)           # (n, i, j, ph, pw, c)
    y = jnp.transpose(y, (0, 5, 1, 3, 2, 4))                     # (n, c, i, ph, j, pw)
    return y.reshape(N, Cout, 2 * H, 2 * W)


def ref_forward(x_nchw, weight, bias, gamma, beta, eps=EPS):
    """Pure-JAX reference: ConvTranspose2d via lhs-dilated conv, then BN(batch stats) + ReLU."""
    w_conv = jnp.transpose(jnp.flip(weight, axis=(2, 3)), (1, 0, 2, 3))  # (Cout, Cin, 3, 3)
    y = lax.conv_general_dilated(
        x_nchw, w_conv, window_strides=(1, 1), padding=((1, 2), (1, 2)),
        lhs_dilation=(2, 2), rhs_dilation=(1, 1),
        dimension_numbers=("NCHW", "OIHW", "NCHW"))
    y = y + bias[None, :, None, None]
    mean = jnp.mean(y, axis=(0, 2, 3), keepdims=True)
    var = jnp.mean((y - mean) ** 2, axis=(0, 2, 3), keepdims=True)
    y = (y - mean) / jnp.sqrt(var + eps)
    y = y * gamma[None, :, None, None] + beta[None, :, None, None]
    return jnp.maximum(y, 0.0)


if __name__ == "__main__":
    key = jax.random.PRNGKey(0)
    N, Cin, Cout, H, W = 2, 4, 8, 16, 16
    k1, k2, k3, k4, k5 = jax.random.split(key, 5)

    x = jax.random.normal(k1, (N, Cin, H, W), jnp.float32)
    weight = 0.2 * jax.random.normal(k2, (Cin, Cout, 3, 3), jnp.float32)  # ConvTranspose2d weight
    bias = 0.1 * jax.random.normal(k3, (Cout,), jnp.float32)              # ConvTranspose2d bias
    gamma = 1.0 + 0.1 * jax.random.normal(k4, (Cout,), jnp.float32)       # BN weight
    beta = 0.1 * jax.random.normal(k5, (Cout,), jnp.float32)              # BN bias

    y_ref = ref_forward(x, weight, bias, gamma, beta)

    # tile_rows=6 deliberately exercises multi-tile partial-stat reduction AND the padded-row
    # path (H=16 is padded to 18 rows).  f32 matmul path first: tight-tolerance logic check.
    y32 = jax.block_until_ready(
        upsampler_block(x, weight, bias, gamma, beta, tile_rows=6,
                        matmul_dtype=jnp.float32))
    assert y32.shape == (N, Cout, 2 * H, 2 * W), y32.shape
    assert jnp.allclose(y32, y_ref, atol=1e-4, rtol=1e-4), float(jnp.max(jnp.abs(y32 - y_ref)))

    # Default bf16 MXU path (f32 accumulation): looser tolerance for the bf16 operand rounding.
    y16 = jax.block_until_ready(
        upsampler_block(x, weight, bias, gamma, beta, tile_rows=6))
    assert y16.shape == (N, Cout, 2 * H, 2 * W), y16.shape
    assert jnp.allclose(y16, y_ref, atol=5e-2, rtol=5e-2), float(jnp.max(jnp.abs(y16 - y_ref)))

    print("KERNEL_OK")
</pallas_src>

<mosaic_0001>
module attributes {stable_mosaic.version = 11 : i64} {
  func.func @stats_kernel(%arg0: i32, %arg1: i32, %arg2: memref<1x6x17x4xf32, #tpu.memory_space<vmem>>, %arg3: memref<1x1x17x4xf32, #tpu.memory_space<vmem>>, %arg4: memref<16x32xf32, #tpu.memory_space<vmem>>, %arg5: memref<1x1x2x32xf32, #tpu.memory_space<vmem>>) attributes {dimension_semantics = [#tpu.dimension_semantics<parallel>, #tpu.dimension_semantics<parallel>], iteration_bounds = array<i64: 2, 3>, scalar_prefetch = 0 : i64, scratch_operands = 0 : i64, tpu.core_type = #tpu.core_type<tc>, window_params = [{transform_indices = @transform_0, window_bounds = array<i64: 1, 6, 17, 4>}, {transform_indices = @transform_1, window_bounds = array<i64: 1, 1, 17, 4>}, {pipeline_mode = #tpu.pipeline_mode<synchronous>, transform_indices = @transform_2, window_bounds = array<i64: 16, 32>}, {transform_indices = @transform_3, window_bounds = array<i64: 1, 1, 2, 32>}]} {
    %c0 = arith.constant 0 : index
    %c0_0 = arith.constant 0 : index
    %c0_1 = arith.constant 0 : index
    %c0_2 = arith.constant 0 : index
    %0 = vector.load %arg2[%c0, %c0_0, %c0_1, %c0_2] : memref<1x6x17x4xf32, #tpu.memory_space<vmem>>, vector<1x6x17x4xf32>
    %1 = vector.shape_cast %0 : vector<1x6x17x4xf32> to vector<6x17x4xf32>
    %2 = vector.extract_strided_slice %1 {offsets = [1, 0, 0], sizes = [5, 17, 4], strides = [1, 1, 1]} : vector<6x17x4xf32> to vector<5x17x4xf32>
    %c0_3 = arith.constant 0 : index
    %c0_4 = arith.constant 0 : index
    %c0_5 = arith.constant 0 : index
    %c0_6 = arith.constant 0 : index
    %3 = vector.load %arg3[%c0_3, %c0_4, %c0_5, %c0_6] : memref<1x1x17x4xf32, #tpu.memory_space<vmem>>, vector<1x1x17x4xf32>
    %4 = vector.shape_cast %3 : vector<1x1x17x4xf32> to vector<1x17x4xf32>
    %5 = tpu.concatenate %2, %4 in 0 : vector<5x17x4xf32>, vector<1x17x4xf32> -> vector<6x17x4xf32>
    %6 = vector.extract_strided_slice %1 {offsets = [0, 0, 0], sizes = [6, 16, 4], strides = [1, 1, 1]} : vector<6x17x4xf32> to vector<6x16x4xf32>
    %7 = vector.extract_strided_slice %1 {offsets = [0, 1, 0], sizes = [6, 16, 4], strides = [1, 1, 1]} : vector<6x17x4xf32> to vector<6x16x4xf32>
    %8 = vector.extract_strided_slice %5 {offsets = [0, 0, 0], sizes = [6, 16, 4], strides = [1, 1, 1]} : vector<6x17x4xf32> to vector<6x16x4xf32>
    %9 = vector.extract_strided_slice %5 {offsets = [0, 1, 0], sizes = [6, 16, 4], strides = [1, 1, 1]} : vector<6x17x4xf32> to vector<6x16x4xf32>
    %10 = tpu.concatenate %6, %7, %8, %9 in 2 : vector<6x16x4xf32>, vector<6x16x4xf32>, vector<6x16x4xf32>, vector<6x16x4xf32> -> vector<6x16x16xf32>
    %11 = vector.shape_cast %10 : vector<6x16x16xf32> to vector<96x16xf32>
    %c0_7 = arith.constant 0 : index
    %c0_8 = arith.constant 0 : index
    %12 = vector.load %arg4[%c0_7, %c0_8] : memref<16x32xf32, #tpu.memory_space<vmem>>, vector<16x32xf32>
    %cst = arith.constant dense<0.000000e+00> : vector<96x32xf32>
    %13 = tpu.matmul %11, %12, %cst {dimension_numbers = #tpu.dot_dimension_numbers<[1], [0], [0], [1], [0, 0, 1, 1], [], []>} : vector<96x16xf32>, vector<16x32xf32>, vector<96x32xf32> -> vector<96x32xf32>
    %cst_9 = arith.constant dense<0.000000e+00> : vector<32xf32>
    %14 = vector.multi_reduction <add>, %13, %cst_9 [0] : vector<96x32xf32> to vector<32xf32>
    %15 = vector.shape_cast %14 : vector<32xf32> to vector<1x32xf32>
    %16 = arith.mulf %13, %13 : vector<96x32xf32>
    %cst_10 = arith.constant dense<0.000000e+00> : vector<32xf32>
    %17 = vector.multi_reduction <add>, %16, %cst_10 [0] : vector<96x32xf32> to vector<32xf32>
    %18 = vector.shape_cast %17 : vector<32xf32> to vector<1x32xf32>
    %19 = tpu.concatenate %15, %18 in 0 : vector<1x32xf32>, vector<1x32xf32> -> vector<2x32xf32>
    %c0_11 = arith.constant 0 : index
    %c0_12 = arith.constant 0 : index
    %c0_13 = arith.constant 0 : index
    %c0_14 = arith.constant 0 : index
    %20 = vector.load %arg5[%c0_11, %c0_12, %c0_13, %c0_14] : memref<1x1x2x32xf32, #tpu.memory_space<vmem>>, vector<1x1x2x32xf32>
    %21 = vector.shape_cast %20 : vector<1x1x2x32xf32> to vector<2x32xf32>
    %22 = vector.shape_cast %19 : vector<2x32xf32> to vector<1x1x2x32xf32>
    tpu.vector_store %arg5[%c0_11, %c0_12, %c0_13, %c0_14], %22 {strides = array<i32>} : memref<1x1x2x32xf32, #tpu.memory_space<vmem>>, vector<1x1x2x32xf32>,
    return
  }
  func.func @transform_0(%arg0: i32, %arg1: i32) -> (i32, i32, i32, i32) {
    %c0_i32 = arith.constant 0 : i32
    %c0_i32_0 = arith.constant 0 : i32
    %c0_i32_1 = arith.constant 0 : i32
    return %arg0, %arg1, %c0_i32, %c0_i32_0 : i32, i32, i32, i32
  }
  func.func @transform_1(%arg0: i32, %arg1: i32) -> (i32, i32, i32, i32) {
    %c1_i32 = arith.constant 1 : i32
    %0 = arith.addi %arg1, %c1_i32 : i32
    %c6_i32 = arith.constant 6 : i32
    %1 = arith.muli %0, %c6_i32 : i32
    %c0_i32 = arith.constant 0 : i32
    %c0_i32_0 = arith.constant 0 : i32
    %c0_i32_1 = arith.constant 0 : i32
    return %arg0, %1, %c0_i32, %c0_i32_0 : i32, i32, i32, i32
  }
  func.func @transform_2(%arg0: i32, %arg1: i32) -> (i32, i32) {
    %c0_i32 = arith.constant 0 : i32
    %c0_i32_0 = arith.constant 0 : i32
    %c0_i32_1 = arith.constant 0 : i32
    return %c0_i32, %c0_i32_0 : i32, i32
  }
  func.func @transform_3(%arg0: i32, %arg1: i32) -> (i32, i32, i32, i32) {
    %c0_i32 = arith.constant 0 : i32
    %c0_i32_0 = arith.constant 0 : i32
    %c0_i32_1 = arith.constant 0 : i32
    return %arg0, %arg1, %c0_i32, %c0_i32_0 : i32, i32, i32, i32
  }
}

</mosaic_0001>

<llo_original>
// kernel: tpu_custom_call.1
$region0: #{tpu_custom_call.1}
  #allocation0 [shape = 'u32[]', space=smem, size = 0x4, offset = 0x4, fixed_abs, tag = 'smem constant byte address 0x4 - core index']
  #allocation1 [shape = 'u32[72,128]{1,0:T(1,128)}', space=vmem, size = 0x9000, scoped, tag = 'internal scratch']
  %s0 = inlined_call_operand.vmem [shape: f32[2,19,17,4], index: 0, kind: input, shape index: {}]
  %s1 = inlined_call_operand.vmem [shape: f32[2,19,17,4], index: 1, kind: input, shape index: {}]
  %s2 = inlined_call_operand.vmem [shape: f32[16,32], index: 2, kind: input, shape index: {}]
  %s3 = inlined_call_operand.hbm [shape: f32[2,3,2,32], index: 3, kind: output, shape index: {}]
  %s4 = sld [smem:[#allocation0]]
  $region45: #{tpu_custom_call.1} parent=0
    _
  %s6 = ssub.s32 1, %s4
  %s7 = scalar_select 0, %s6, %s4
  $region1: #{tpu_custom_call.1} parent=0
    #allocation2 [shape = 'u8[2048]{0}', space=vmem, size = 0x800, scoped, tag = 'output window, operand 0']
    #allocation3 [shape = 's32[2]{0}', space=sflag, size = 0x8, scoped, tag = 'scoped memory for tpu_custom_call.1']
    %8 = vsyncpa [#allocation3], 0
    %s9 = scalar_lea.sflag [#allocation3], 1
    %10 = vsyncpa %s9, 0
    loop: start=0, step=1, limit=8
    $region2: #{tpu_custom_call.1} parent=1 // loop_pre_header
      _
    $region3: #{tpu_custom_call.1} parent=1 // loop_header
      %s12 = sphi 0, %s16
      %p13 = scmp.ge.s32.totalorder %s12, 8
      %s19 = sphi 0, %s31
      %s20 = sphi 0, %s27
      %s21 = sphi 0, %s19
      %s22 = sphi 0, %s20
      %s23 = sphi 0, %s21
      %s24 = sphi 0, %s22
      %s36 = sphi 0, %s38
      %s39 = sphi 0, %s36
      %s40 = sphi 0, %s39
      %s56 = sphi 0, %s40
      %s68 = sphi 0, %s70
      %s71 = sphi 0, %s68
      %s72 = sphi 0, %s71
      %s88 = sphi 0, %s72
      %s92 = sphi 0, %s92
      %s94 = sphi 0, %s92
      %s95 = sphi 0, %s94
      %s109 = sphi 0, %s95
      %s117 = sphi 0, %s119
      %s120 = sphi 0, %s117
      %s121 = sphi 0, %s120
      %s137 = sphi 0, %s121
    $region4: #{tpu_custom_call.1} parent=1 // loop_header_branch
      %15 = sbr.rel (%p13) target = $region8
    $region5: #{tpu_custom_call.1} parent=1 // loop_body
      %s17 = ssub.s32 %s12, 1
      %s18 = ssub.s32 %s12, 2
      %s25 = sadd.s32 1, %s20
      %p26 = scmp.ge.s32.totalorder %s25, 3
      %s27 = scalar_select %p26, 0, %s25
      %s28 = sadd.s32 1, %s19
      %s29 = scalar_select %p26, %s28, %s19
      %p30 = scmp.ge.s32.totalorder %s29, 2
      %s31 = scalar_select %p30, 0, %s29
      %s32 = ssub.s32 %s19, %s31
      %s33 = ssub.s32 %s20, %s27
      %s34 = sor.u32 %s32, %s33
      %p35 = scmp.eq.s32.totalorder %s34, 0
      %s37 = sadd.s32 %s36, 1
      %s38 = scalar_select %p35, %s36, %s37
      %p41 = pneg %p35
      %p42 = scmp.eq.s32.totalorder %s12, 5
      %p43 = por %p41, %p42
      %p44 = scmp.ne.s32.totalorder %s36, %s39
      %p45 = scmp.eq.s32.totalorder %s12, 0
      %p46 = por %p44, %p45
      %p47 = scmp.ne.s32.totalorder %s36, %s39
      %p48 = scmp.eq.s32.totalorder %s17, 5
      %p49 = por %p47, %p48
      %p50 = scmp.ne.s32.totalorder %s39, %s40
      %p51 = scmp.eq.s32.totalorder %s17, 0
      %p52 = por %p50, %p51
      %p53 = scmp.ne.s32.totalorder %s39, %s40
      %p54 = scmp.eq.s32.totalorder %s18, 5
      %p55 = por %p53, %p54
      %p57 = scmp.ne.s32.totalorder %s40, %s56
      %p58 = scmp.eq.s32.totalorder %s18, 0
      %p59 = por %p57, %p58
      %s60 = sadd.s32 %s20, 1
      %s61 = smul.u32 %s60, 6
      %s62 = sadd.s32 %s27, 1
      %s63 = smul.u32 %s62, 6
      %s64 = ssub.s32 %s19, %s31
      %s65 = ssub.s32 %s61, %s63
      %s66 = sor.u32 %s64, %s65
      %p67 = scmp.eq.s32.totalorder %s66, 0
      %s69 = sadd.s32 %s68, 1
      %s70 = scalar_select %p67, %s68, %s69
      %p73 = pneg %p67
      %p74 = scmp.eq.s32.totalorder %s12, 5
      %p75 = por %p73, %p74
      %p76 = scmp.ne.s32.totalorder %s68, %s71
      %p77 = scmp.eq.s32.totalorder %s12, 0
      %p78 = por %p76, %p77
      %p79 = scmp.ne.s32.totalorder %s68, %s71
      %p80 = scmp.eq.s32.totalorder %s17, 5
      %p81 = por %p79, %p80
      %p82 = scmp.ne.s32.totalorder %s71, %s72
      %p83 = scmp.eq.s32.totalorder %s17, 0
      %p84 = por %p82, %p83
      %p85 = scmp.ne.s32.totalorder %s71, %s72
      %p86 = scmp.eq.s32.totalorder %s18, 5
      %p87 = por %p85, %p86
      %p89 = scmp.ne.s32.totalorder %s72, %s88
      %p90 = scmp.eq.s32.totalorder %s18, 0
      %p91 = por %p89, %p90
      %s93 = sadd.s32 %s92, 1
      %p96 = scmp.eq.s32.totalorder %s12, 5
      %p97 = scmp.ne.s32.totalorder %s92, %s94
      %p98 = scmp.eq.s32.totalorder %s12, 0
      %p99 = por %p97, %p98
      %p100 = scmp.ne.s32.totalorder %s92, %s94
      %p101 = scmp.eq.s32.totalorder %s17, 5
      %p102 = por %p100, %p101
      %p103 = scmp.ne.s32.totalorder %s94, %s95
      %p104 = scmp.eq.s32.totalorder %s17, 0
      %p105 = por %p103, %p104
      %p106 = scmp.ne.s32.totalorder %s94, %s95
      %p107 = scmp.eq.s32.totalorder %s18, 5
      %p108 = por %p106, %p107
      %p110 = scmp.ne.s32.totalorder %s95, %s109
      %p111 = scmp.eq.s32.totalorder %s18, 0
      %p112 = por %p110, %p111
      %s113 = ssub.s32 %s19, %s31
      %s114 = ssub.s32 %s20, %s27
      %s115 = sor.u32 %s113, %s114
      %p116 = scmp.eq.s32.totalorder %s115, 0
      %s118 = sadd.s32 %s117, 1
      %s119 = scalar_select %p116, %s117, %s118
      %p122 = pneg %p116
      %p123 = scmp.eq.s32.totalorder %s12, 5
      %p124 = por %p122, %p123
      %p125 = scmp.ne.s32.totalorder %s117, %s120
      %p126 = scmp.eq.s32.totalorder %s12, 0
      %p127 = por %p125, %p126
      %p128 = scmp.ne.s32.totalorder %s117, %s120
      %p129 = scmp.eq.s32.totalorder %s17, 5
      %p130 = por %p128, %p129
      %p131 = scmp.ne.s32.totalorder %s120, %s121
      %p132 = scmp.eq.s32.totalorder %s17, 0
      %p133 = por %p131, %p132
      %p134 = scmp.ne.s32.totalorder %s120, %s121
      %p135 = scmp.eq.s32.totalorder %s18, 5
      %p136 = por %p134, %p135
      %p138 = scmp.ne.s32.totalorder %s121, %s137
      %p139 = scmp.eq.s32.totalorder %s18, 0
      %p140 = por %p138, %p139
      %p141 = scmp.le.s32.totalorder 1, %s12
      %p142 = scmp.lt.s32.totalorder %s12, 7
      %p143 = pnand %p141, %p142
      %p144 = pneg %p143
      // Predicated region
      $region9: #{tpu_custom_call.1} parent=5 // pred_check
        _
      $region10: #{tpu_custom_call.1} parent=5 // pred_check_branch
        %146 = sbr.rel (%p143) target = $region12
      $region11: #{tpu_custom_call.1} parent=5 // pred_region
        %s147 = ssub.s32 %s12, 1
        // Predicated region
        $region13: #{tpu_custom_call.1} parent=11 // pred_check
          %p148 = pneg %p105
        $region14: #{tpu_custom_call.1} parent=11 // pred_check_branch
          %150 = sbr.rel (%p148) target = $region16
        $region15: #{tpu_custom_call.1} parent=11 // pred_region
          _
        $region16: #{tpu_custom_call.1} parent=11 // pred_fallthru
          _
      $region12: #{tpu_custom_call.1} parent=5 // pred_fallthru
        _
      %p151 = scmp.lt.s32.totalorder %s12, 6
      // Predicated region
      $region17: #{tpu_custom_call.1} parent=5 // pred_check
        %p152 = pneg %p151
      $region18: #{tpu_custom_call.1} parent=5 // pred_check_branch
        %154 = sbr.rel (%p152) target = $region20
      $region19: #{tpu_custom_call.1} parent=5 // pred_region
        // Predicated region
        $region21: #{tpu_custom_call.1} parent=19 // pred_check
          %p155 = pneg %p46
        $region22: #{tpu_custom_call.1} parent=19 // pred_check_branch
          %157 = sbr.rel (%p155) target = $region24
        $region23: #{tpu_custom_call.1} parent=19 // pred_region
          %s158 = smul.u32 6, %s20
          %s159 = ssub.s32 19, %s158
          %p160 = scmp.lt.s32.totalorder %s159, 6
          %s161 = scalar_select %p160, %s159, 6
          %s162 = smul.u32 8, %s161
          %s163 = smul.u32 %s162, 3
          %p164 = scmp.lt.s32.totalorder %s19, 1
          %s165 = scalar_select %p164, %s19, 1
          %p166 = scmp.lt.s32.totalorder %s158, 18
          %s167 = scalar_select %p166, %s158, 18
          %s168 = smul.addr %s167, 3
          %s169 = smul.addr %s165, 57
          %s170 = sadd.s32 %s168, %s169
          %s171 = smul.addr %s170, 8
          %s172 = scalar_lea.vmem %s0, %s171
          %s173 = smul.u32 6, %s20
          %s174 = ssub.s32 19, %s173
          %p175 = scmp.lt.s32.totalorder %s174, 6
          %s176 = scalar_select %p175, %s174, 6
          %s177 = smul.u32 8, %s176
          %s178 = smul.u32 %s177, 3
        $region24: #{tpu_custom_call.1} parent=19 // pred_fallthru
          _
        // Predicated region
        $region25: #{tpu_custom_call.1} parent=19 // pred_check
          %p179 = pneg %p78
        $region26: #{tpu_custom_call.1} parent=19 // pred_check_branch
          %181 = sbr.rel (%p179) target = $region28
        $region27: #{tpu_custom_call.1} parent=19 // pred_region
          %s182 = sadd.s32 %s20, 1
          %s183 = smul.u32 %s182, 6
          %p184 = scmp.lt.s32.totalorder %s19, 1
          %s185 = scalar_select %p184, %s19, 1
          %p186 = scmp.lt.s32.totalorder %s183, 18
          %s187 = scalar_select %p186, %s183, 18
          %s188 = smul.addr %s187, 3
          %s189 = smul.addr %s185, 57
          %s190 = sadd.s32 %s188, %s189
          %s191 = smul.addr %s190, 8
          %s192 = scalar_lea.vmem %s1, %s191
          %s193 = sadd.s32 %s20, 1
          %s194 = smul.u32 %s193, 6
        $region28: #{tpu_custom_call.1} parent=19 // pred_fallthru
          _
      $region20: #{tpu_custom_call.1} parent=5 // pred_fallthru
        _
      %p195 = scmp.le.s32.totalorder 1, %s12
      %p196 = scmp.lt.s32.totalorder %s12, 7
      %p197 = pnand %p195, %p196
      %p198 = pneg %p197
      // Predicated region
      $region29: #{tpu_custom_call.1} parent=5 // pred_check
        _
      $region30: #{tpu_custom_call.1} parent=5 // pred_check_branch
        %200 = sbr.rel (%p197) target = $region32
      $region31: #{tpu_custom_call.1} parent=5 // pred_region
        %s201 = ssub.s32 %s12, 1
        %s202 = smul.u32 6, %s22
        %s203 = ssub.s32 19, %s202
        %p204 = scmp.lt.s32.totalorder %s203, 6
        %s205 = scalar_select %p204, %s203, 6
        %s206 = smul.u32 8, %s205
        %s207 = smul.u32 %s206, 3
        %p208 = scmp.lt.s32.totalorder %s21, 1
        %s209 = scalar_select %p208, %s21, 1
        %p210 = scmp.lt.s32.totalorder %s202, 18
        %s211 = scalar_select %p210, %s202, 18
        %s212 = smul.addr %s211, 3
        %s213 = smul.addr %s209, 57
        %s214 = sadd.s32 %s212, %s213
        %s215 = smul.addr %s214, 8
        %s216 = scalar_lea.vmem %s0, %s215
        %p217 = pneg %p52
        %p218 = pneg %p49
        %s219 = sadd.s32 %s22, 1
        %s220 = smul.u32 %s219, 6
        %p221 = scmp.lt.s32.totalorder %s21, 1
        %s222 = scalar_select %p221, %s21, 1
        %p223 = scmp.lt.s32.totalorder %s220, 18
        %s224 = scalar_select %p223, %s220, 18
        %s225 = smul.addr %s224, 3
        %s226 = smul.addr %s222, 57
        %s227 = sadd.s32 %s225, %s226
        %s228 = smul.addr %s227, 8
        %s229 = scalar_lea.vmem %s1, %s228
        %p230 = pneg %p84
        %p231 = pneg %p81
        %p232 = pneg %p105
        %p233 = pneg %p102
        %p234 = pneg %p133
        %p235 = pneg %p130
        %s236 = sand.u32 %s120, 1
        %s237 = scalar_lea.sflag [#allocation3], %s236
        %s238 = sand.u32 %s120, 1
        %s239 = smul.addr %s238, 2
        %s240 = scalar_lea.vmem [#allocation2], %s239
        %s241 = smul.u32 6, %s22
        %s242 = ssub.s32 19, %s241
        %p243 = scmp.lt.s32.totalorder %s242, 6
        %s244 = scalar_select %p243, %s242, 6
        %s245 = smul.u32 8, %s244
        %s246 = smul.u32 %s245, 3
        %p247 = scmp.lt.s32.totalorder %s21, 1
        %s248 = scalar_select %p247, %s21, 1
        %p249 = scmp.lt.s32.totalorder %s241, 18
        %s250 = scalar_select %p249, %s241, 18
        %s251 = smul.addr %s250, 3
        %s252 = smul.addr %s248, 57
        %s253 = sadd.s32 %s251, %s252
        %s254 = smul.addr %s253, 8
        %s255 = scalar_lea.vmem %s0, %s254
        %s256 = smul.u32 6, %s22
        %s257 = ssub.s32 19, %s256
        %p258 = scmp.lt.s32.totalorder %s257, 6
        %s259 = scalar_select %p258, %s257, 6
        %s260 = smul.u32 8, %s259
        %s261 = smul.u32 %s260, 3
        %s262 = sadd.s32 %s22, 1
        %s263 = smul.u32 %s262, 6
        %p264 = scmp.lt.s32.totalorder %s21, 1
        %s265 = scalar_select %p264, %s21, 1
        %p266 = scmp.lt.s32.totalorder %s263, 18
        %s267 = scalar_select %p266, %s263, 18
        %s268 = smul.addr %s267, 3
        %s269 = smul.addr %s265, 57
        %s270 = sadd.s32 %s268, %s269
        %s271 = smul.addr %s270, 8
        %s272 = scalar_lea.vmem %s1, %s271
        %s273 = sadd.s32 %s22, 1
        %s274 = smul.u32 %s273, 6
        %v275 = vld [vmem:[%s255] sm:$0xff]
        %v276 = vld [vmem:[%s255 + $0x8] sm:$0xff]
        %v277 = vld [vmem:[%s255 + $0x10] sm:$0x1]
        %v278 = vld [vmem:[%s255 + $0x18] sm:$0xff]
        %v279 = vld [vmem:[%s255 + $0x20] sm:$0xff]
        %v280 = vld [vmem:[%s255 + $0x28] sm:$0x1]
        %v281 = vld [vmem:[%s255 + $0x30] sm:$0xff]
        %v282 = vld [vmem:[%s255 + $0x38] sm:$0xff]
        %v283 = vld [vmem:[%s255 + $0x40] sm:$0x1]
        %v284 = vld [vmem:[%s255 + $0x48] sm:$0xff]
        %v285 = vld [vmem:[%s255 + $0x50] sm:$0xff]
        %v286 = vld [vmem:[%s255 + $0x58] sm:$0x1]
        %v287 = vld [vmem:[%s255 + $0x60] sm:$0xff]
        %v288 = vld [vmem:[%s255 + $0x68] sm:$0xff]
        %v289 = vld [vmem:[%s255 + $0x70] sm:$0x1]
        %v290 = vld [vmem:[%s255 + $0x78] sm:$0xff]
        %v291 = vld [vmem:[%s255 + $0x80] sm:$0xff]
        %v292 = vld [vmem:[%s255 + $0x88] sm:$0x1]
        %v293 = vld [vmem:[%s272] sm:$0xff]
        %v294 = vld [vmem:[%s272 + $0x8] sm:$0xff]
        %v295 = vld [vmem:[%s272 + $0x10] sm:$0x1]
        %vm314 = vcmask 1046528
        %v315 = vrot.slane %v275, 1
        %v316 = vrot.slane %v276, 1
        %v317 = vsel %vm314, %v315, %v316
        %v318 = vrot.slane %v277, 1
        %v319 = vsel %vm314, %v316, %v318
        %v320 = vrot.slane %v278, 1
        %v321 = vrot.slane %v279, 1
        %v322 = vsel %vm314, %v320, %v321
        %v323 = vrot.slane %v280, 1
        %v324 = vsel %vm314, %v321, %v323
        %v325 = vrot.slane %v281, 1
        %v326 = vrot.slane %v282, 1
        %v327 = vsel %vm314, %v325, %v326
        %v328 = vrot.slane %v283, 1
        %v329 = vsel %vm314, %v326, %v328
        %v330 = vrot.slane %v284, 1
        %v331 = vrot.slane %v285, 1
        %v332 = vsel %vm314, %v330, %v331
        %v333 = vrot.slane %v286, 1
        %v334 = vsel %vm314, %v331, %v333
        %v335 = vrot.slane %v287, 1
        %v336 = vrot.slane %v288, 1
        %v337 = vsel %vm314, %v335, %v336
        %v338 = vrot.slane %v289, 1
        %v339 = vsel %vm314, %v336, %v338
        %v340 = vrot.slane %v290, 1
        %v341 = vrot.slane %v291, 1
        %v342 = vsel %vm314, %v340, %v341
        %v343 = vrot.slane %v292, 1
        %v344 = vsel %vm314, %v341, %v343
        %345 = vrot.lane.b32.xlu0 %v317, 4
        %v346 = vpop.permute.xlu0 %345
        %347 = vrot.lane.b32.xlu0 %v319, 4
        %v348 = vpop.permute.xlu0 %347
        %349 = vrot.lane.b32.xlu0 %v322, 4
        %v350 = vpop.permute.xlu0 %349
        %351 = vrot.lane.b32.xlu0 %v324, 4
        %v352 = vpop.permute.xlu0 %351
        %353 = vrot.lane.b32.xlu0 %v327, 4
        %v354 = vpop.permute.xlu0 %353
        %355 = vrot.lane.b32.xlu0 %v329, 4
        %v356 = vpop.permute.xlu0 %355
        %357 = vrot.lane.b32.xlu0 %v332, 4
        %v358 = vpop.permute.xlu0 %357
        %359 = vrot.lane.b32.xlu0 %v334, 4
        %v360 = vpop.permute.xlu0 %359
        %361 = vrot.lane.b32.xlu0 %v337, 4
        %v362 = vpop.permute.xlu0 %361
        %363 = vrot.lane.b32.xlu0 %v339, 4
        %v364 = vpop.permute.xlu0 %363
        %365 = vrot.lane.b32.xlu0 %v342, 4
        %v366 = vpop.permute.xlu0 %365
        %367 = vrot.lane.b32.xlu0 %v344, 4
        %v368 = vpop.permute.xlu0 %367
        %383 = vrot.lane.b32.xlu0 %v278, 8
        %v384 = vpop.permute.xlu0 %383
        %385 = vrot.lane.b32.xlu0 %v279, 8
        %v386 = vpop.permute.xlu0 %385
        %387 = vrot.lane.b32.xlu0 %v281, 8
        %v388 = vpop.permute.xlu0 %387
        %389 = vrot.lane.b32.xlu0 %v282, 8
        %v390 = vpop.permute.xlu0 %389
        %391 = vrot.lane.b32.xlu0 %v284, 8
        %v392 = vpop.permute.xlu0 %391
        %393 = vrot.lane.b32.xlu0 %v285, 8
        %v394 = vpop.permute.xlu0 %393
        %395 = vrot.lane.b32.xlu0 %v287, 8
        %v396 = vpop.permute.xlu0 %395
        %397 = vrot.lane.b32.xlu0 %v288, 8
        %v398 = vpop.permute.xlu0 %397
        %399 = vrot.lane.b32.xlu0 %v290, 8
        %v400 = vpop.permute.xlu0 %399
        %401 = vrot.lane.b32.xlu0 %v291, 8
        %v402 = vpop.permute.xlu0 %401
        %403 = vrot.lane.b32.xlu0 %v293, 8
        %v404 = vpop.permute.xlu0 %403
        %405 = vrot.lane.b32.xlu0 %v294, 8
        %v406 = vpop.permute.xlu0 %405
        %v420 = vrot.slane %v293, 1
        %v421 = vrot.slane %v294, 1
        %v422 = vsel %vm314, %v420, %v421
        %v423 = vrot.slane %v295, 1
        %v424 = vsel %vm314, %v421, %v423
        %425 = vrot.lane.b32.xlu0 %v322, 12
        %v426 = vpop.permute.xlu0 %425
        %427 = vrot.lane.b32.xlu0 %v324, 12
        %v428 = vpop.permute.xlu0 %427
        %429 = vrot.lane.b32.xlu0 %v327, 12
        %v430 = vpop.permute.xlu0 %429
        %431 = vrot.lane.b32.xlu0 %v329, 12
        %v432 = vpop.permute.xlu0 %431
        %433 = vrot.lane.b32.xlu0 %v332, 12
        %v434 = vpop.permute.xlu0 %433
        %435 = vrot.lane.b32.xlu0 %v334, 12
        %v436 = vpop.permute.xlu0 %435
        %437 = vrot.lane.b32.xlu0 %v337, 12
        %v438 = vpop.permute.xlu0 %437
        %439 = vrot.lane.b32.xlu0 %v339, 12
        %v440 = vpop.permute.xlu0 %439
        %441 = vrot.lane.b32.xlu0 %v342, 12
        %v442 = vpop.permute.xlu0 %441
        %443 = vrot.lane.b32.xlu0 %v344, 12
        %v444 = vpop.permute.xlu0 %443
        %445 = vrot.lane.b32.xlu0 %v422, 12
        %v446 = vpop.permute.xlu0 %445
        %447 = vrot.lane.b32.xlu0 %v424, 12
        %v448 = vpop.permute.xlu0 %447
        %vm461 = vcmask 31744
        %v462 = vsel %vm461, %v275, %v346
        %v463 = vsel %vm461, %v276, %v348
        %v464 = vsel %vm461, %v278, %v350
        %v465 = vsel %vm461, %v279, %v352
        %v466 = vsel %vm461, %v281, %v354
        %v467 = vsel %vm461, %v282, %v356
        %v468 = vsel %vm461, %v284, %v358
        %v469 = vsel %vm461, %v285, %v360
        %v470 = vsel %vm461, %v287, %v362
        %v471 = vsel %vm461, %v288, %v364
        %v472 = vsel %vm461, %v290, %v366
        %v473 = vsel %vm461, %v291, %v368
        %vm474 = vcmask 64512
        %v475 = vsel %vm474, %v462, %v384
        %v476 = vsel %vm474, %v463, %v386
        %v477 = vsel %vm474, %v464, %v388
        %v478 = vsel %vm474, %v465, %v390
        %v479 = vsel %vm474, %v466, %v392
        %v480 = vsel %vm474, %v467, %v394
        %v481 = vsel %vm474, %v468, %v396
        %v482 = vsel %vm474, %v469, %v398
        %v483 = vsel %vm474, %v470, %v400
        %v484 = vsel %vm474, %v471, %v402
        %v485 = vsel %vm474, %v472, %v404
        %v486 = vsel %vm474, %v473, %v406
        %vm487 = vcmask 97280
        %v488 = vsel %vm487, %v475, %v426
        %v489 = vsel %vm487, %v476, %v428
        %v490 = vsel %vm487, %v477, %v430
        %v491 = vsel %vm487, %v478, %v432
        %v492 = vsel %vm487, %v479, %v434
        %v493 = vsel %vm487, %v480, %v436
        %v494 = vsel %vm487, %v481, %v438
        %v495 = vsel %vm487, %v482, %v440
        %v496 = vsel %vm487, %v483, %v442
        %v497 = vsel %vm487, %v484, %v444
        %v498 = vsel %vm487, %v485, %v446
        %v499 = vsel %vm487, %v486, %v448
        %v500 = vld [vmem:[%s2] sm:$0xff]
        %v501 = vld [vmem:[%s2 + $0x8] sm:$0xff]
        %vm502 = vcmask 130048
        %v504 = vsel %vm502, %v488, 0
        %v507 = vsel %vm502, %v489, 0
        %v510 = vsel %vm502, %v490, 0
        %v513 = vsel %vm502, %v491, 0
        %v516 = vsel %vm502, %v492, 0
        %v519 = vsel %vm502, %v493, 0
        %v522 = vsel %vm502, %v494, 0
        %v525 = vsel %vm502, %v495, 0
        %v528 = vsel %vm502, %v496, 0
        %v531 = vsel %vm502, %v497, 0
        %v534 = vsel %vm502, %v498, 0
        %v537 = vsel %vm502, %v499, 0
        %539 = vmatpush.msra.mxu0 0.0
        %540 = vmatpush.msra.mxu0 0.0
        %541 = vmatpush.msra.mxu0 0.0
        %542 = vmatpush.msra.mxu0 0.0
        %543 = vmatpush.msra.mxu0 0.0
        %544 = vmatpush.msra.mxu0 0.0
        %545 = vmatpush.msra.mxu0 0.0
        %546 = vmatpush.msra.mxu0 0.0
        %547 = vmatpush.msra.mxu0 0.0
        %548 = vmatpush.msra.mxu0 0.0
        %549 = vmatpush.msra.mxu0 0.0
        %550 = vmatpush.msra.mxu0 0.0
        %551 = vmatpush.msra.mxu0 0.0
        %552 = vmatpush.msra.mxu0 0.0
        %553 = vmatpush.msra.mxu0 %v501
        %554 = vmatpush.msra.mxu0 %v500
        %555 = vmatmul.f32.gmra.mxu0 %v504
        %v556 = vpop.f32.mrf.mxu0
        %v557 = vadd.f32 0.0, %v556
        %558 = vmatmul.f32.gmra.mxu0 %v507
        %v559 = vpop.f32.mrf.mxu0
        %v560 = vadd.f32 0.0, %v559
        %561 = vmatmul.f32.gmra.mxu0 %v510
        %v562 = vpop.f32.mrf.mxu0
        %v563 = vadd.f32 0.0, %v562
        %564 = vmatmul.f32.gmra.mxu0 %v513
        %v565 = vpop.f32.mrf.mxu0
        %v566 = vadd.f32 0.0, %v565
        %567 = vmatmul.f32.gmra.mxu0 %v516
        %v568 = vpop.f32.mrf.mxu0
        %v569 = vadd.f32 0.0, %v568
        %570 = vmatmul.f32.gmra.mxu0 %v519
        %v571 = vpop.f32.mrf.mxu0
        %v572 = vadd.f32 0.0, %v571
        %573 = vmatmul.f32.gmra.mxu0 %v522
        %v574 = vpop.f32.mrf.mxu0
        %v575 = vadd.f32 0.0, %v574
        %576 = vmatmul.f32.gmra.mxu0 %v525
        %v577 = vpop.f32.mrf.mxu0
        %v578 = vadd.f32 0.0, %v577
        %579 = vmatmul.f32.gmra.mxu0 %v528
        %v580 = vpop.f32.mrf.mxu0
        %v581 = vadd.f32 0.0, %v580
        %582 = vmatmul.f32.gmra.mxu0 %v531
        %v583 = vpop.f32.mrf.mxu0
        %v584 = vadd.f32 0.0, %v583
        %585 = vmatmul.f32.gmra.mxu0 %v534
        %v586 = vpop.f32.mrf.mxu0
        %v587 = vadd.f32 0.0, %v586
        %588 = vmatmul.f32.gmra.mxu0 %v537
        %v589 = vpop.f32.mrf.mxu0
        %v590 = vadd.f32 0.0, %v589
        %591 = vdwg.mxu0
        %vm592 = vcmask 261120
        %v593 = vsel %vm592, %v557, 0.0
        %v594 = vsel %vm592, %v560, 0.0
        %v595 = vadd.f32 %v593, %v594
        %v596 = vsel %vm592, %v563, 0.0
        %v597 = vadd.f32 %v595, %v596
        %v598 = vsel %vm592, %v566, 0.0
        %v599 = vadd.f32 %v597, %v598
        %v600 = vsel %vm592, %v569, 0.0
        %v601 = vadd.f32 %v599, %v600
        %v602 = vsel %vm592, %v572, 0.0
        %v603 = vadd.f32 %v601, %v602
        %v604 = vsel %vm592, %v575, 0.0
        %v605 = vadd.f32 %v603, %v604
        %v606 = vsel %vm592, %v578, 0.0
        %v607 = vadd.f32 %v605, %v606
        %v608 = vsel %vm592, %v581, 0.0
        %v609 = vadd.f32 %v607, %v608
        %v610 = vsel %vm592, %v584, 0.0
        %v611 = vadd.f32 %v609, %v610
        %v612 = vsel %vm592, %v587, 0.0
        %v613 = vadd.f32 %v611, %v612
        %v614 = vsel %vm592, %v590, 0.0
        %v615 = vadd.f32 %v613, %v614
        %v616 = vrot.slane %v615, 4
        %v617 = vadd.f32 %v615, %v616
        %v618 = vrot.slane %v617, 2
        %v619 = vadd.f32 %v617, %v618
        %v620 = vrot.slane %v619, 1
        %v621 = vadd.f32 %v619, %v620
        %v622 = vmul.f32 %v557, %v557
        %v623 = vmul.f32 %v560, %v560
        %v624 = vmul.f32 %v563, %v563
        %v625 = vmul.f32 %v566, %v566
        %v626 = vmul.f32 %v569, %v569
        %v627 = vmul.f32 %v572, %v572
        %v628 = vmul.f32 %v575, %v575
        %v629 = vmul.f32 %v578, %v578
        %v630 = vmul.f32 %v581, %v581
        %v631 = vmul.f32 %v584, %v584
        %v632 = vmul.f32 %v587, %v587
        %v633 = vmul.f32 %v590, %v590
        %v634 = vsel %vm592, %v622, 0.0
        %v635 = vsel %vm592, %v623, 0.0
        %v636 = vadd.f32 %v634, %v635
        %v637 = vsel %vm592, %v624, 0.0
        %v638 = vadd.f32 %v636, %v637
        %v639 = vsel %vm592, %v625, 0.0
        %v640 = vadd.f32 %v638, %v639
        %v641 = vsel %vm592, %v626, 0.0
        %v642 = vadd.f32 %v640, %v641
        %v643 = vsel %vm592, %v627, 0.0
        %v644 = vadd.f32 %v642, %v643
        %v645 = vsel %vm592, %v628, 0.0
        %v646 = vadd.f32 %v644, %v645
        %v647 = vsel %vm592, %v629, 0.0
        %v648 = vadd.f32 %v646, %v647
        %v649 = vsel %vm592, %v630, 0.0
        %v650 = vadd.f32 %v648, %v649
        %v651 = vsel %vm592, %v631, 0.0
        %v652 = vadd.f32 %v650, %v651
        %v653 = vsel %vm592, %v632, 0.0
        %v654 = vadd.f32 %v652, %v653
        %v655 = vsel %vm592, %v633, 0.0
        %v656 = vadd.f32 %v654, %v655
        %v657 = vrot.slane %v656, 4
        %v658 = vadd.f32 %v656, %v657
        %v659 = vrot.slane %v658, 2
        %v660 = vadd.f32 %v658, %v659
        %v661 = vrot.slane %v660, 1
        %v662 = vadd.f32 %v660, %v661
        %vm663 = vcmask 1040384
        %v664 = vsel %vm663, %v621, %v662
        %vm665 = vcmask 254976
        %666 = vst.msk [vmem:[%s240] sm:$0x3] %vm665, %v664
        %s667 = sand.u32 %s120, 1
        %s668 = scalar_lea.sflag [#allocation3], %s667
        %s669 = sand.u32 %s120, 1
        %s670 = smul.addr %s669, 2
        %s671 = scalar_lea.vmem [#allocation2], %s670
        // Predicated region
        $region33: #{tpu_custom_call.1} parent=31 // pred_check
          %p672 = pneg %p130
        $region34: #{tpu_custom_call.1} parent=31 // pred_check_branch
          %674 = sbr.rel (%p672) target = $region36
        $region35: #{tpu_custom_call.1} parent=31 // pred_region
          %676 = vsyncadd %s668, 0
          %s677 = smul.addr %s21, 3
          %s678 = sadd.s32 %s22, %s677
          %s679 = smul.addr %s678, 2
          %s680 = scalar_lea.hbm %s3, %s679
          %s682 = sshll.u32 %s671, 4
          %s683 = int_to_ptr.vmem [resolvable:$true] %s682
          %s684 = sshll.u32 %s680, 4
          %s685 = int_to_ptr.hbm [resolvable:$true] %s684
          %687 = dma.vmem_to_hbm [thread:$0]  %s683, 32, %s685, %s668
        $region36: #{tpu_custom_call.1} parent=31 // pred_fallthru
          _
      $region32: #{tpu_custom_call.1} parent=5 // pred_fallthru
        _
      %p688 = scmp.le.s32.totalorder 2, %s12
      // Predicated region
      $region37: #{tpu_custom_call.1} parent=5 // pred_check
        %p689 = pneg %p688
      $region38: #{tpu_custom_call.1} parent=5 // pred_check_branch
        %691 = sbr.rel (%p689) target = $region40
      $region39: #{tpu_custom_call.1} parent=5 // pred_region
        %s692 = ssub.s32 %s12, 2
        // Predicated region
        $region41: #{tpu_custom_call.1} parent=39 // pred_check
          %p693 = pneg %p136
        $region42: #{tpu_custom_call.1} parent=39 // pred_check_branch
          %695 = sbr.rel (%p693) target = $region44
        $region43: #{tpu_custom_call.1} parent=39 // pred_region
          %s696 = sand.u32 %s121, 1
          %s697 = scalar_lea.sflag [#allocation3], %s696
          %s698 = sand.u32 %s121, 1
          %s699 = smul.addr %s698, 2
          %s700 = scalar_lea.vmem [#allocation2], %s699
          %702 = dma.done %s697, 32
        $region44: #{tpu_custom_call.1} parent=39 // pred_fallthru
          _
      $region40: #{tpu_custom_call.1} parent=5 // pred_fallthru
        _
    $region6: #{tpu_custom_call.1} parent=1 // loop_footer
      %s16 = sadd.s32 1, %s12
    $region7: #{tpu_custom_call.1} parent=1 // loop_footer_branch
      %11 = sbr.rel target = $region3
    $region8: #{tpu_custom_call.1} parent=1 // loop_exit
      _
    %703 = vsyncpa [#allocation3], 1
    %s704 = scalar_lea.sflag [#allocation3], 1
    %705 = vsyncpa %s704, 1

</llo_original>
